<compile_context>
chip_gen: v5e
topology: v5e:2x2
jax: 0.10.0
libtpu: 0.0.40
codegen_flags: <defaults>
</compile_context>

<pallas_src>
import functools

import jax
import jax.numpy as jnp
from jax.experimental import pallas as pl
from jax.experimental.pallas import tpu as pltpu

EPS = 1e-5


def _round_up(n, m):
    return ((n + m - 1) // m) * m


def _vmem_limit_bytes():
    """Scoped-VMEM limit to request, leaving headroom under physical VMEM."""
    try:
        kind = jax.devices()[0].device_kind.lower()
    except Exception:
        kind = ""
    if "v7" in kind:
        return 48 << 20  # v7x: 64 MiB physical per TensorCore -> leave headroom
    return 64 << 20      # v5e / v6e: 128 MiB physical


def _pick_tile_rows(rows, d_pad, in_bytes, out_bytes, vmem_limit):
    """Largest row tile that fits the VMEM budget and keeps >= 2 grid blocks."""
    # Pipelined buffers: 2 (double-buffer) x (input + output) blocks per row,
    # plus ~3 full-tile f32 intermediates inside the kernel body.
    per_row = d_pad * (2 * (in_bytes + out_bytes) + 3 * 4)
    budget = (vmem_limit * 7) // 10  # headroom for weight/bias blocks + slack
    max_rows_by_vmem = max(8, budget // per_row)
    # Keep at least 2 grid blocks so v7x's 2 TensorCores both get work.
    two_block_cap = max(8, _round_up((rows + 1) // 2, 8))
    cap = min(max_rows_by_vmem, two_block_cap)
    for cand in (1024, 512, 256, 128, 64, 32, 16, 8):
        if cand <= cap:
            return cand
    return 8


def _make_kernel(has_bias, d_real, d_pad):
    """Build a LayerNorm kernel specialized on bias presence and lane padding."""
    needs_mask = d_real != d_pad
    inv_d = 1.0 / float(d_real)

    def _compute(x, w, b):
        x = x.astype(jnp.float32)
        if needs_mask:
            lane = jax.lax.broadcasted_iota(jnp.int32, x.shape, dimension=1)
            mask = lane < d_real
            xm = jnp.where(mask, x, 0.0)
            mean = jnp.sum(xm, axis=-1, keepdims=True) * inv_d
            centered = jnp.where(mask, x - mean, 0.0)
            var = jnp.sum(centered * centered, axis=-1, keepdims=True) * inv_d
        else:
            mean = jnp.mean(x, axis=-1, keepdims=True)
            centered = x - mean
            var = jnp.mean(centered * centered, axis=-1, keepdims=True)
        inv = jax.lax.rsqrt(var + EPS)
        y = centered * inv * w.astype(jnp.float32)
        if has_bias:
            y = y + b.astype(jnp.float32)
        return y

    if has_bias:
        def kernel(x_ref, w_ref, b_ref, o_ref):
            o_ref[...] = _compute(x_ref[...], w_ref[...], b_ref[...]).astype(o_ref.dtype)
    else:
        def kernel(x_ref, w_ref, o_ref):
            o_ref[...] = _compute(x_ref[...], w_ref[...], None).astype(o_ref.dtype)
    return kernel


@functools.partial(jax.jit, static_argnames=("tile_rows",))
def layer_norm(x, weight, bias=None, *, tile_rows=None):
    """LayerNorm over the last dim of x, matching F.layer_norm(..., eps=1e-5).

    x: (..., D); weight: (D,); bias: (D,) or None.
    """
    orig_shape = x.shape
    D = orig_shape[-1]
    rows = 1
    for s in orig_shape[:-1]:
        rows *= s
    x2 = x.reshape(rows, D)

    # Lane-dense feature dim: pad D to a multiple of 128 (min 128) so the
    # output block is written with unmasked full-lane stores. The in-kernel
    # masked reduction keeps mean/var exact over the real D.
    D_pad = max(128, _round_up(D, 128))
    if D_pad != D:
        x2 = jnp.pad(x2, ((0, 0), (0, D_pad - D)))
        weight_p = jnp.pad(weight, (0, D_pad - D))
        bias_p = None if bias is None else jnp.pad(bias, (0, D_pad - D))
    else:
        weight_p = weight
        bias_p = bias

    has_bias = bias is not None
    in_bytes = jnp.dtype(x.dtype).itemsize
    out_bytes = in_bytes
    vmem_limit = _vmem_limit_bytes()

    if tile_rows is None:
        tile_rows = _pick_tile_rows(rows, D_pad, in_bytes, out_bytes, vmem_limit)
    # TODO(synk): for very large D (e.g. f32 D >= 32K on v7x) even 8-row tiles
    # blow the VMEM budget; a D-tiled two-pass (sum/sumsq scratch + pl.when
    # finalize) variant would be needed there.

    grid = (pl.cdiv(rows, tile_rows),)  # ragged last block handled by Pallas

    operands = [x2, weight_p.reshape(1, D_pad)]
    in_specs = [
        pl.BlockSpec((tile_rows, D_pad), lambda i: (i, 0)),
        pl.BlockSpec((1, D_pad), lambda i: (0, 0)),
    ]
    if has_bias:
        operands.append(bias_p.reshape(1, D_pad))
        in_specs.append(pl.BlockSpec((1, D_pad), lambda i: (0, 0)))

    out = pl.pallas_call(
        _make_kernel(has_bias, D, D_pad),
        out_shape=jax.ShapeDtypeStruct((rows, D_pad), x.dtype),
        grid_spec=pltpu.PrefetchScalarGridSpec(
            num_scalar_prefetch=0,
            grid=grid,
            in_specs=in_specs,
            out_specs=pl.BlockSpec((tile_rows, D_pad), lambda i: (i, 0)),
        ),
        compiler_params=pltpu.CompilerParams(
            dimension_semantics=("parallel",),
            vmem_limit_bytes=vmem_limit,
        ),
    )(*operands)

    if D_pad != D:
        out = out[:, :D]
    return out.reshape(orig_shape)


def _reference_layer_norm(x, weight, bias):
    xf = x.astype(jnp.float32)
    mean = jnp.mean(xf, axis=-1, keepdims=True)
    var = jnp.mean((xf - mean) ** 2, axis=-1, keepdims=True)
    y = (xf - mean) / jnp.sqrt(var + EPS)
    y = y * weight.astype(jnp.float32)
    if bias is not None:
        y = y + bias.astype(jnp.float32)
    return y.astype(x.dtype)


if __name__ == "__main__":
    key = jax.random.PRNGKey(0)
    B, T, D = 2, 8, 32  # batch=2, seq=8, hidden=32

    x = jax.random.normal(key, (B, T, D), dtype=jnp.float32)

    # Deterministic parameter init, matching nn.Parameter(torch.ones/zeros(ndim))
    weight = jnp.ones((D,), dtype=jnp.float32)
    bias = jnp.zeros((D,), dtype=jnp.float32)

    # With-bias variant (LayerNorm(ndim, bias=True))
    out = jax.block_until_ready(layer_norm(x, weight, bias))
    ref = _reference_layer_norm(x, weight, bias)
    assert jnp.allclose(out, ref, atol=1e-5, rtol=1e-5), "bias=True mismatch"

    # No-bias variant (LayerNorm(ndim, bias=False))
    out_nb = jax.block_until_ready(layer_norm(x, weight, None))
    ref_nb = _reference_layer_norm(x, weight, None)
    assert jnp.allclose(out_nb, ref_nb, atol=1e-5, rtol=1e-5), "bias=False mismatch"

    # Extra check: ragged row count + non-multiple-of-128 D exercises the
    # cdiv grid and the masked lane-padding path with non-trivial params.
    x3 = jax.random.normal(jax.random.PRNGKey(1), (2, 7, 96), dtype=jnp.float32)
    w3 = jax.random.normal(jax.random.PRNGKey(2), (96,), dtype=jnp.float32)
    b3 = jax.random.normal(jax.random.PRNGKey(3), (96,), dtype=jnp.float32)
    out3 = jax.block_until_ready(layer_norm(x3, w3, b3))
    ref3 = _reference_layer_norm(x3, w3, b3)
    assert jnp.allclose(out3, ref3, atol=1e-4, rtol=1e-4), "ragged/padded mismatch"

    print("KERNEL_OK")
</pallas_src>

<mosaic_0001>
module attributes {stable_mosaic.version = 11 : i64} {
  func.func @kernel(%arg0: i32, %arg1: memref<8x128xf32, #tpu.memory_space<vmem>>, %arg2: memref<1x128xf32, #tpu.memory_space<vmem>>, %arg3: memref<1x128xf32, #tpu.memory_space<vmem>>, %arg4: memref<8x128xf32, #tpu.memory_space<vmem>>) attributes {dimension_semantics = [#tpu.dimension_semantics<parallel>], iteration_bounds = array<i64: 2>, scalar_prefetch = 0 : i64, scratch_operands = 0 : i64, tpu.core_type = #tpu.core_type<tc>, window_params = [{transform_indices = @transform_0, window_bounds = array<i64: 8, 128>}, {pipeline_mode = #tpu.pipeline_mode<synchronous>, transform_indices = @transform_1, window_bounds = array<i64: 1, 128>}, {pipeline_mode = #tpu.pipeline_mode<synchronous>, transform_indices = @transform_2, window_bounds = array<i64: 1, 128>}, {transform_indices = @transform_3, window_bounds = array<i64: 8, 128>}]} {
    %c0 = arith.constant 0 : index
    %c0_0 = arith.constant 0 : index
    %0 = vector.load %arg1[%c0, %c0_0] : memref<8x128xf32, #tpu.memory_space<vmem>>, vector<8x128xf32>
    %c0_1 = arith.constant 0 : index
    %c0_2 = arith.constant 0 : index
    %1 = vector.load %arg2[%c0_1, %c0_2] : memref<1x128xf32, #tpu.memory_space<vmem>>, vector<1x128xf32>
    %c0_3 = arith.constant 0 : index
    %c0_4 = arith.constant 0 : index
    %2 = vector.load %arg3[%c0_3, %c0_4] : memref<1x128xf32, #tpu.memory_space<vmem>>, vector<1x128xf32>
    %3 = tpu.iota {dimensions = array<i32: 1>} : vector<8x128xi32>
    %c32_i32 = arith.constant 32 : i32
    %4 = vector.broadcast %c32_i32 : i32 to vector<8x128xi32>
    %5 = arith.cmpi slt, %3, %4 : vector<8x128xi32>
    %cst = arith.constant 0.000000e+00 : f32
    %6 = vector.broadcast %cst : f32 to vector<8x128xf32>
    %7 = arith.select %5, %0, %6 : vector<8x128xi1>, vector<8x128xf32>
    %cst_5 = arith.constant dense<0.000000e+00> : vector<8xf32>
    %8 = vector.multi_reduction <add>, %7, %cst_5 [1] : vector<8x128xf32> to vector<8xf32>
    %9 = vector.shape_cast %8 : vector<8xf32> to vector<8x1xf32>
    %cst_6 = arith.constant 3.125000e-02 : f32
    %10 = vector.broadcast %cst_6 : f32 to vector<8x1xf32>
    %11 = arith.mulf %9, %10 : vector<8x1xf32>
    %12 = vector.broadcast %11 : vector<8x1xf32> to vector<8x128xf32>
    %13 = arith.subf %0, %12 : vector<8x128xf32>
    %cst_7 = arith.constant 0.000000e+00 : f32
    %14 = vector.broadcast %cst_7 : f32 to vector<8x128xf32>
    %15 = arith.select %5, %13, %14 : vector<8x128xi1>, vector<8x128xf32>
    %16 = arith.mulf %15, %15 : vector<8x128xf32>
    %cst_8 = arith.constant dense<0.000000e+00> : vector<8xf32>
    %17 = vector.multi_reduction <add>, %16, %cst_8 [1] : vector<8x128xf32> to vector<8xf32>
    %18 = vector.shape_cast %17 : vector<8xf32> to vector<8x1xf32>
    %cst_9 = arith.constant 3.125000e-02 : f32
    %19 = vector.broadcast %cst_9 : f32 to vector<8x1xf32>
    %20 = arith.mulf %18, %19 : vector<8x1xf32>
    %cst_10 = arith.constant 9.99999974E-6 : f32
    %21 = vector.broadcast %cst_10 : f32 to vector<8x1xf32>
    %22 = arith.addf %20, %21 : vector<8x1xf32>
    %23 = math.rsqrt %22 : vector<8x1xf32>
    %24 = vector.broadcast %23 : vector<8x1xf32> to vector<8x128xf32>
    %25 = arith.mulf %15, %24 : vector<8x128xf32>
    %26 = vector.broadcast %1 : vector<1x128xf32> to vector<8x128xf32>
    %27 = arith.mulf %25, %26 : vector<8x128xf32>
    %28 = vector.broadcast %2 : vector<1x128xf32> to vector<8x128xf32>
    %29 = arith.addf %27, %28 : vector<8x128xf32>
    %c0_11 = arith.constant 0 : index
    %c0_12 = arith.constant 0 : index
    %30 = vector.load %arg4[%c0_11, %c0_12] : memref<8x128xf32, #tpu.memory_space<vmem>>, vector<8x128xf32>
    tpu.vector_store %arg4[%c0_11, %c0_12], %29 {strides = array<i32>} : memref<8x128xf32, #tpu.memory_space<vmem>>, vector<8x128xf32>,
    return
  }
  func.func @transform_0(%arg0: i32) -> (i32, i32) {
    %c0_i32 = arith.constant 0 : i32
    %c0_i32_0 = arith.constant 0 : i32
    return %arg0, %c0_i32 : i32, i32
  }
  func.func @transform_1(%arg0: i32) -> (i32, i32) {
    %c0_i32 = arith.constant 0 : i32
    %c0_i32_0 = arith.constant 0 : i32
    %c0_i32_1 = arith.constant 0 : i32
    return %c0_i32, %c0_i32_0 : i32, i32
  }
  func.func @transform_2(%arg0: i32) -> (i32, i32) {
    %c0_i32 = arith.constant 0 : i32
    %c0_i32_0 = arith.constant 0 : i32
    %c0_i32_1 = arith.constant 0 : i32
    return %c0_i32, %c0_i32_0 : i32, i32
  }
  func.func @transform_3(%arg0: i32) -> (i32, i32) {
    %c0_i32 = arith.constant 0 : i32
    %c0_i32_0 = arith.constant 0 : i32
    return %arg0, %c0_i32 : i32, i32
  }
}

</mosaic_0001>

<llo_original>
// kernel: layer_norm.1
$region0: #{layer_norm.1}
  #allocation0 [shape = 'u32[]', space=smem, size = 0x4, offset = 0x4, fixed_abs, tag = 'smem constant byte address 0x4 - core index']
  #allocation1 [shape = 'u32[72,128]{1,0:T(1,128)}', space=vmem, size = 0x9000, scoped, tag = 'internal scratch']
  %s0 = inlined_call_operand.vmem [shape: f32[16,128], index: 0, kind: input, shape index: {}]
  %s1 = inlined_call_operand.vmem [shape: f32[1,128], index: 1, kind: input, shape index: {}]
  %s2 = inlined_call_operand.vmem [shape: f32[1,128], index: 2, kind: input, shape index: {}]
  %s3 = inlined_call_operand.vmem [shape: f32[16,128], index: 3, kind: output, shape index: {}]
  %s4 = sld [smem:[#allocation0]]
  $region45: #{layer_norm.1} parent=0
    _
  %s6 = ssub.s32 1, %s4
  %s7 = scalar_select 0, %s6, %s4
  loop: start=0, step=1, limit=4
  $region2: #{layer_norm.1} parent=0 // loop_pre_header
    _
  $region3: #{layer_norm.1} parent=0 // loop_header
    %s9 = sphi 0, %s13
    %p10 = scmp.ge.s32.totalorder %s9, 4
    %s19 = sphi 0, %s21
    %s22 = sphi 0, %s19
    %s23 = sphi 0, %s22
    %s39 = sphi 0, %s23
    %s43 = sphi 0, %s43
    %s45 = sphi 0, %s43
    %s46 = sphi 0, %s45
    %s60 = sphi 0, %s46
    %s64 = sphi 0, %s64
    %s66 = sphi 0, %s64
    %s67 = sphi 0, %s66
    %s81 = sphi 0, %s67
    %s87 = sphi 0, %s89
    %s90 = sphi 0, %s87
    %s91 = sphi 0, %s90
    %s107 = sphi 0, %s91
  $region4: #{layer_norm.1} parent=0 // loop_header_branch
    %12 = sbr.rel (%p10) target = $region8
  $region5: #{layer_norm.1} parent=0 // loop_body
    %s14 = ssub.s32 %s9, 1
    %s15 = ssub.s32 %s9, 2
    %s16 = sadd.s32 %s9, 1
    %s17 = ssub.s32 %s9, %s16
    %p18 = scmp.eq.s32.totalorder %s17, 0
    %s20 = sadd.s32 %s19, 1
    %s21 = scalar_select %p18, %s19, %s20
    %p24 = pneg %p18
    %p25 = scmp.eq.s32.totalorder %s9, 1
    %p26 = por %p24, %p25
    %p27 = scmp.ne.s32.totalorder %s19, %s22
    %p28 = scmp.eq.s32.totalorder %s9, 0
    %p29 = por %p27, %p28
    %p30 = scmp.ne.s32.totalorder %s19, %s22
    %p31 = scmp.eq.s32.totalorder %s14, 1
    %p32 = por %p30, %p31
    %p33 = scmp.ne.s32.totalorder %s22, %s23
    %p34 = scmp.eq.s32.totalorder %s14, 0
    %p35 = por %p33, %p34
    %p36 = scmp.ne.s32.totalorder %s22, %s23
    %p37 = scmp.eq.s32.totalorder %s15, 1
    %p38 = por %p36, %p37
    %p40 = scmp.ne.s32.totalorder %s23, %s39
    %p41 = scmp.eq.s32.totalorder %s15, 0
    %p42 = por %p40, %p41
    %s44 = sadd.s32 %s43, 1
    %p47 = scmp.eq.s32.totalorder %s9, 1
    %p48 = scmp.ne.s32.totalorder %s43, %s45
    %p49 = scmp.eq.s32.totalorder %s9, 0
    %p50 = por %p48, %p49
    %p51 = scmp.ne.s32.totalorder %s43, %s45
    %p52 = scmp.eq.s32.totalorder %s14, 1
    %p53 = por %p51, %p52
    %p54 = scmp.ne.s32.totalorder %s45, %s46
    %p55 = scmp.eq.s32.totalorder %s14, 0
    %p56 = por %p54, %p55
    %p57 = scmp.ne.s32.totalorder %s45, %s46
    %p58 = scmp.eq.s32.totalorder %s15, 1
    %p59 = por %p57, %p58
    %p61 = scmp.ne.s32.totalorder %s46, %s60
    %p62 = scmp.eq.s32.totalorder %s15, 0
    %p63 = por %p61, %p62
    %s65 = sadd.s32 %s64, 1
    %p68 = scmp.eq.s32.totalorder %s9, 1
    %p69 = scmp.ne.s32.totalorder %s64, %s66
    %p70 = scmp.eq.s32.totalorder %s9, 0
    %p71 = por %p69, %p70
    %p72 = scmp.ne.s32.totalorder %s64, %s66
    %p73 = scmp.eq.s32.totalorder %s14, 1
    %p74 = por %p72, %p73
    %p75 = scmp.ne.s32.totalorder %s66, %s67
    %p76 = scmp.eq.s32.totalorder %s14, 0
    %p77 = por %p75, %p76
    %p78 = scmp.ne.s32.totalorder %s66, %s67
    %p79 = scmp.eq.s32.totalorder %s15, 1
    %p80 = por %p78, %p79
    %p82 = scmp.ne.s32.totalorder %s67, %s81
    %p83 = scmp.eq.s32.totalorder %s15, 0
    %p84 = por %p82, %p83
    %s85 = ssub.s32 %s9, %s16
    %p86 = scmp.eq.s32.totalorder %s85, 0
    %s88 = sadd.s32 %s87, 1
    %s89 = scalar_select %p86, %s87, %s88
    %p92 = pneg %p86
    %p93 = scmp.eq.s32.totalorder %s9, 1
    %p94 = por %p92, %p93
    %p95 = scmp.ne.s32.totalorder %s87, %s90
    %p96 = scmp.eq.s32.totalorder %s9, 0
    %p97 = por %p95, %p96
    %p98 = scmp.ne.s32.totalorder %s87, %s90
    %p99 = scmp.eq.s32.totalorder %s14, 1
    %p100 = por %p98, %p99
    %p101 = scmp.ne.s32.totalorder %s90, %s91
    %p102 = scmp.eq.s32.totalorder %s14, 0
    %p103 = por %p101, %p102
    %p104 = scmp.ne.s32.totalorder %s90, %s91
    %p105 = scmp.eq.s32.totalorder %s15, 1
    %p106 = por %p104, %p105
    %p108 = scmp.ne.s32.totalorder %s91, %s107
    %p109 = scmp.eq.s32.totalorder %s15, 0
    %p110 = por %p108, %p109
    %p111 = scmp.le.s32.totalorder 1, %s9
    %p112 = scmp.lt.s32.totalorder %s9, 3
    %p113 = pnand %p111, %p112
    %p114 = pneg %p113
    // Predicated region
    $region9: #{layer_norm.1} parent=5 // pred_check
      _
    $region10: #{layer_norm.1} parent=5 // pred_check_branch
      %116 = sbr.rel (%p113) target = $region12
    $region11: #{layer_norm.1} parent=5 // pred_region
      %s117 = ssub.s32 %s9, 1
      // Predicated region
      $region13: #{layer_norm.1} parent=11 // pred_check
        %p118 = pneg %p56
      $region14: #{layer_norm.1} parent=11 // pred_check_branch
        %120 = sbr.rel (%p118) target = $region16
      $region15: #{layer_norm.1} parent=11 // pred_region
        _
      $region16: #{layer_norm.1} parent=11 // pred_fallthru
        _
      // Predicated region
      $region17: #{layer_norm.1} parent=11 // pred_check
        %p121 = pneg %p77
      $region18: #{layer_norm.1} parent=11 // pred_check_branch
        %123 = sbr.rel (%p121) target = $region20
      $region19: #{layer_norm.1} parent=11 // pred_region
        _
      $region20: #{layer_norm.1} parent=11 // pred_fallthru
        _
    $region12: #{layer_norm.1} parent=5 // pred_fallthru
      _
    %p124 = scmp.lt.s32.totalorder %s9, 2
    // Predicated region
    $region21: #{layer_norm.1} parent=5 // pred_check
      %p125 = pneg %p124
    $region22: #{layer_norm.1} parent=5 // pred_check_branch
      %127 = sbr.rel (%p125) target = $region24
    $region23: #{layer_norm.1} parent=5 // pred_region
      // Predicated region
      $region25: #{layer_norm.1} parent=23 // pred_check
        %p128 = pneg %p29
      $region26: #{layer_norm.1} parent=23 // pred_check_branch
        %130 = sbr.rel (%p128) target = $region28
      $region27: #{layer_norm.1} parent=23 // pred_region
        %p131 = scmp.lt.s32.totalorder %s9, 1
        %s132 = scalar_select %p131, %s9, 1
        %s133 = smul.addr %s132, 8
        %s134 = scalar_lea.vmem %s0, %s133
      $region28: #{layer_norm.1} parent=23 // pred_fallthru
        _
    $region24: #{layer_norm.1} parent=5 // pred_fallthru
      _
    %p135 = scmp.le.s32.totalorder 1, %s9
    %p136 = scmp.lt.s32.totalorder %s9, 3
    %p137 = pnand %p135, %p136
    %p138 = pneg %p137
    // Predicated region
    $region29: #{layer_norm.1} parent=5 // pred_check
      _
    $region30: #{layer_norm.1} parent=5 // pred_check_branch
      %140 = sbr.rel (%p137) target = $region32
    $region31: #{layer_norm.1} parent=5 // pred_region
      %s141 = ssub.s32 %s9, 1
      %p142 = scmp.lt.s32.totalorder %s14, 1
      %s143 = scalar_select %p142, %s14, 1
      %s144 = smul.addr %s143, 8
      %s145 = scalar_lea.vmem %s0, %s144
      %p146 = pneg %p35
      %p147 = pneg %p32
      %p148 = pneg %p56
      %p149 = pneg %p53
      %p150 = pneg %p77
      %p151 = pneg %p74
      %p152 = pneg %p103
      %p153 = pneg %p100
      %p154 = scmp.lt.s32.totalorder %s14, 1
      %s155 = scalar_select %p154, %s14, 1
      %s156 = smul.addr %s155, 8
      %s157 = scalar_lea.vmem %s3, %s156
      %p158 = scmp.lt.s32.totalorder %s14, 1
      %s159 = scalar_select %p158, %s14, 1
      %s160 = smul.addr %s159, 8
      %s161 = scalar_lea.vmem %s0, %s160
      %p162 = scmp.lt.s32.totalorder %s14, 1
      %s163 = scalar_select %p162, %s14, 1
      %s164 = smul.addr %s163, 8
      %s165 = scalar_lea.vmem %s3, %s164
      %v166 = vld [vmem:[%s161] sm:$0xff]
      %v167 = vld [vmem:[%s1] sm:$0x1]
      %v168 = vld [vmem:[%s2] sm:$0x1]
      %v169 = vlaneseq
      %v170 = vand.u32 %v169, 127
      %vm171 = vcmp.lt.s32.totalorder %v170, 32
      %v172 = vsel %vm171, %v166, 0.0
      %173 = vadd.xlane.f32.xlu0 %v172
      %v174 = vpop.xlane.xlu0 %173
      %v175 = vmul.f32 %v174, 0.03125
      %v176 = vsub.f32 %v166, %v175
      %v177 = vsel %vm171, %v176, 0.0
      %v178 = vmul.f32 %v177, %v177
      %179 = vadd.xlane.f32.xlu0 %v178
      %v180 = vpop.xlane.xlu0 %179
      %v181 = vmul.f32 %v180, 0.03125
      %v182 = vadd.f32 %v181, 1e-05
      %v183 = vrsqrt.pop %v182
      %v184 = vmul.f32 %v183, %v182
      %v185 = vmul.f32 %v184, %v183
      %v186 = vmul.f32 0.5, %v185
      %v187 = vsub.f32 1.5, %v186
      %v188 = vmul.f32 %v183, %v187
      %vm189 = vweird.f32 %v182
      %vm190 = vweird.f32 %v183
      %vm191 = vmor %vm189, %vm190
      %v192 = vsel %vm191, %v183, %v188
      %v193 = vmul.f32 %v177, %v192
      %v195 = vperm.slane %v167, 0
      %v197 = vmul.f32 %v193, %v195
      %v199 = vperm.slane %v168, 0
      %v201 = vadd.f32 %v197, %v199
      %202 = vst [vmem:[%s165] sm:$0xff] %v201
      %p203 = scmp.lt.s32.totalorder %s14, 1
      %s204 = scalar_select %p203, %s14, 1
      %s205 = smul.addr %s204, 8
      %s206 = scalar_lea.vmem %s3, %s205
      // Predicated region
      $region33: #{layer_norm.1} parent=31 // pred_check
        %p207 = pneg %p100
      $region34: #{layer_norm.1} parent=31 // pred_check_branch
        %209 = sbr.rel (%p207) target = $region36
      $region35: #{layer_norm.1} parent=31 // pred_region
        _
      $region36: #{layer_norm.1} parent=31 // pred_fallthru
        _
    $region32: #{layer_norm.1} parent=5 // pred_fallthru
      _
    %p210 = scmp.le.s32.totalorder 2, %s9
    // Predicated region
    $region37: #{layer_norm.1} parent=5 // pred_check
      %p211 = pneg %p210
    $region38: #{layer_norm.1} parent=5 // pred_check_branch
      %213 = sbr.rel (%p211) target = $region40
    $region39: #{layer_norm.1} parent=5 // pred_region
      %s214 = ssub.s32 %s9, 2
      // Predicated region
      $region41: #{layer_norm.1} parent=39 // pred_check
        %p215 = pneg %p106
      $region42: #{layer_norm.1} parent=39 // pred_check_branch
        %217 = sbr.rel (%p215) target = $region44
      $region43: #{layer_norm.1} parent=39 // pred_region
        %p218 = scmp.lt.s32.totalorder %s15, 1
        %s219 = scalar_select %p218, %s15, 1
        %s220 = smul.addr %s219, 8
        %s221 = scalar_lea.vmem %s3, %s220
      $region44: #{layer_norm.1} parent=39 // pred_fallthru
        _
    $region40: #{layer_norm.1} parent=5 // pred_fallthru
      _
  $region6: #{layer_norm.1} parent=0 // loop_footer
    %s13 = sadd.s32 1, %s9
  $region7: #{layer_norm.1} parent=0 // loop_footer_branch
    %8 = sbr.rel target = $region3
  $region8: #{layer_norm.1} parent=0 // loop_exit
    _

</llo_original>
